<compile_context>
chip_gen: v6e
topology: v6e:2x2x1
jax: 0.10.0
libtpu: 0.0.40
codegen_flags: <defaults>
</compile_context>

<pallas_src>
import jax
import jax.numpy as jnp
from jax.experimental import pallas as pl
from jax.experimental.pallas import tpu as pltpu

_LANES = 128


def _affine_kernel(w_ref, b_ref, x_ref, o_ref):
    # w_ref, b_ref: SMEM scalars (shape (1,))
    # x_ref, o_ref: lane-dense VMEM tiles of shape (rows, 128), float32
    # y = x * w + b  — single VPU mul+add per vreg, broadcast from SMEM scalars.
    o_ref[...] = x_ref[...] * w_ref[0] + b_ref[0]


def regression_forward(x, w, b):
    """x: (N, 1) float32, w: (1, 1) float32, b: (1,) float32 -> (N, 1) float32."""
    n = x.shape[0]
    rows = max(1, pl.cdiv(n, _LANES))
    padded = rows * _LANES

    # Flatten the batch onto the lane axis and pad to a multiple of 128 so the
    # kernel sees a lane-dense (rows, 128) block (contiguous DMA, unmasked vst).
    x_flat = jnp.pad(x.reshape(-1).astype(jnp.float32), (0, padded - n))
    x_lane = x_flat.reshape(rows, _LANES)

    w_s = w.reshape(1).astype(jnp.float32)
    b_s = b.reshape(1).astype(jnp.float32)

    y_lane = pl.pallas_call(
        _affine_kernel,
        out_shape=jax.ShapeDtypeStruct((rows, _LANES), jnp.float32),
        in_specs=[
            pl.BlockSpec(memory_space=pltpu.MemorySpace.SMEM),   # w (scalar)
            pl.BlockSpec(memory_space=pltpu.MemorySpace.SMEM),   # b (scalar)
            pl.BlockSpec(memory_space=pltpu.MemorySpace.VMEM),   # x (whole array)
        ],
        out_specs=pl.BlockSpec(memory_space=pltpu.MemorySpace.VMEM),
    )(w_s, b_s, x_lane)

    # Undo the layout transform: back to PyTorch's (N, 1) column.
    return y_lane.reshape(-1)[:n].reshape(n, 1)


if __name__ == "__main__":
    key = jax.random.PRNGKey(0)
    kx, kw, kb = jax.random.split(key, 3)

    # Input mirrors `np.random.rand(100, 1)` from the reference script.
    x = jax.random.uniform(kx, (100, 1), dtype=jnp.float32)

    # nn.Linear(1, 1) parameter shapes; default init U(-1/sqrt(in), 1/sqrt(in)) = U(-1, 1).
    w = jax.random.uniform(kw, (1, 1), dtype=jnp.float32, minval=-1.0, maxval=1.0)
    b = jax.random.uniform(kb, (1,), dtype=jnp.float32, minval=-1.0, maxval=1.0)

    y = regression_forward(x, w, b)
    y = jax.block_until_ready(y)

    # Pure-JAX reference check (x @ W^T + b).
    y_ref = x @ w.T + b
    assert y.shape == (100, 1)
    assert jnp.allclose(y, y_ref, atol=1e-5, rtol=1e-5)

    print("KERNEL_OK")
</pallas_src>

<mosaic_0001>
module attributes {stable_mosaic.version = 11 : i64} {
  func.func @_affine_kernel(%arg0: memref<1xf32, #tpu.memory_space<smem>>, %arg1: memref<1xf32, #tpu.memory_space<smem>>, %arg2: memref<1x128xf32, #tpu.memory_space<vmem>>, %arg3: memref<1x128xf32, #tpu.memory_space<vmem>>) attributes {dimension_semantics = [], scalar_prefetch = 0 : i64, scratch_operands = 0 : i64, tpu.core_type = #tpu.core_type<tc>} {
    %c0 = arith.constant 0 : index
    %c0_0 = arith.constant 0 : index
    %0 = vector.load %arg2[%c0, %c0_0] : memref<1x128xf32, #tpu.memory_space<vmem>>, vector<1x128xf32>
    %c0_1 = arith.constant 0 : index
    %1 = memref.load %arg0[%c0_1] : memref<1xf32, #tpu.memory_space<smem>>
    %2 = vector.broadcast %1 : f32 to vector<1x128xf32>
    %3 = arith.mulf %0, %2 : vector<1x128xf32>
    %c0_2 = arith.constant 0 : index
    %4 = memref.load %arg1[%c0_2] : memref<1xf32, #tpu.memory_space<smem>>
    %5 = vector.broadcast %4 : f32 to vector<1x128xf32>
    %6 = arith.addf %3, %5 : vector<1x128xf32>
    %c0_3 = arith.constant 0 : index
    %c0_4 = arith.constant 0 : index
    %7 = vector.load %arg3[%c0_3, %c0_4] : memref<1x128xf32, #tpu.memory_space<vmem>>, vector<1x128xf32>
    tpu.vector_store %arg3[%c0_3, %c0_4], %6 {strides = array<i32>} : memref<1x128xf32, #tpu.memory_space<vmem>>, vector<1x128xf32>,
    return
  }
}

</mosaic_0001>

<llo_original>
// kernel: tpu_custom_call.1
$region0: #{tpu_custom_call.1}
  #allocation0 [shape = 'u32[]', space=smem, size = 0x4, offset = 0x4, fixed_abs, tag = 'smem constant byte address 0x4 - core index']
  #allocation1 [shape = 'u32[144,128]{1,0:T(1,128)}', space=vmem, size = 0x12000, scoped, tag = 'internal scratch']
  #allocation2 [shape = 'f32[1]{0:T(128)S(6)}', space=smem, size = 0x200, scoped, tag = 'scoped memory for tpu_custom_call.1']
  #allocation3 [shape = 'f32[1]{0:T(128)S(6)}', space=smem, size = 0x200, scoped, tag = 'scoped memory for tpu_custom_call.1']
  %s0 = inlined_call_operand.<no memory space> [shape: f32[1], index: 0, kind: input, shape index: {}]
  %s1 = inlined_call_operand.<no memory space> [shape: f32[1], index: 1, kind: input, shape index: {}]
  %s2 = inlined_call_operand.vmem [shape: f32[1,128], index: 2, kind: input, shape index: {}]
  %s3 = inlined_call_operand.hbm [shape: f32[1,128], index: 3, kind: output, shape index: {}]
  %s4 = sld [smem:[#allocation0]]
  $region22: #{tpu_custom_call.1} parent=0
    _
  %s6 = ssub.s32 1, %s4
  %s7 = scalar_select 0, %s6, %s4
  %8 = sst [smem:[#allocation2]] %s0
  %9 = sst [smem:[#allocation3]] %s1
  $region1: #{tpu_custom_call.1} parent=0
    #allocation4 [shape = 'u8[512]{0}', space=vmem, size = 0x400, scoped, tag = 'output window, operand 0, single buffered']
    #allocation5 [shape = 's32[1]{0}', space=sflag, size = 0x4, scoped, tag = 'scoped memory for tpu_custom_call.1']
    %10 = vsyncpa [#allocation5], 0
    // Predicated region
    $region2: #{tpu_custom_call.1} parent=1 // pred_check
      _
    $region3: #{tpu_custom_call.1} parent=1 // pred_check_branch
      %12 = sbr.rel (0) target = $region5
    $region4: #{tpu_custom_call.1} parent=1 // pred_region
      _
    $region5: #{tpu_custom_call.1} parent=1 // pred_fallthru
      _
    // Predicated region
    $region6: #{tpu_custom_call.1} parent=1 // pred_check
      _
    $region7: #{tpu_custom_call.1} parent=1 // pred_check_branch
      %14 = sbr.rel (0) target = $region9
    $region8: #{tpu_custom_call.1} parent=1 // pred_region
      _
    $region9: #{tpu_custom_call.1} parent=1 // pred_fallthru
      _
    // Predicated region
    $region10: #{tpu_custom_call.1} parent=1 // pred_check
      _
    $region11: #{tpu_custom_call.1} parent=1 // pred_check_branch
      %16 = sbr.rel (0) target = $region13
    $region12: #{tpu_custom_call.1} parent=1 // pred_region
      _
    $region13: #{tpu_custom_call.1} parent=1 // pred_fallthru
      _
    %v17 = vld [vmem:[%s2] sm:$0x1]
    %s18 = sld [smem:[#allocation2]]
    %v19 = vstv %s18
    %v20 = vmul.f32 %v17, %v19
    %s21 = sld [smem:[#allocation3]]
    %v22 = vstv %s21
    %v23 = vadd.f32 %v20, %v22
    %24 = vst [vmem:[#allocation4] sm:$0x1] %v23
    // Predicated region
    $region14: #{tpu_custom_call.1} parent=1 // pred_check
      _
    $region15: #{tpu_custom_call.1} parent=1 // pred_check_branch
      %26 = sbr.rel (0) target = $region17
    $region16: #{tpu_custom_call.1} parent=1 // pred_region
      %s28 = ssub.s32 16, 16
      %29 = vsyncadd [#allocation5], %s28
      %s31 = sshll.u32 [#allocation4], 4
      %s32 = int_to_ptr.vmem [resolvable:$true] %s31
      %34 = dma.vmem_to_hbm [thread:$0]  %s32, 16, %s3, [#allocation5]
    $region17: #{tpu_custom_call.1} parent=1 // pred_fallthru
      _
    // Predicated region
    $region18: #{tpu_custom_call.1} parent=1 // pred_check
      _
    $region19: #{tpu_custom_call.1} parent=1 // pred_check_branch
      %36 = sbr.rel (0) target = $region21
    $region20: #{tpu_custom_call.1} parent=1 // pred_region
      %37 = dma.done [#allocation5], 16
    $region21: #{tpu_custom_call.1} parent=1 // pred_fallthru
      _
    %38 = vsyncpa [#allocation5], 1

</llo_original>
